<compile_context>
chip_gen: v7x
topology: tpu7x:2x2x1
jax: 0.10.0
libtpu: 0.0.40
codegen_flags: <defaults>
</compile_context>

<pallas_src>
import functools

import numpy as np
import jax
import jax.numpy as jnp
from jax import lax
from jax.experimental import pallas as pl
from jax.experimental.pallas import tpu as pltpu


def _round_up(x, m):
    return ((x + m - 1) // m) * m


def _mmd_tile_kernel(i_tbl_ref, j_tbl_ref, scale_ref, xr_ref, xc_ref, out_ref, *,
                     tm, tn, n_src, n_tgt, n_valid, kernel_mul, kernel_num):
    """One upper-triangular (i, j) tile of the summed Gaussian kernel matrix,
    reduced to a signed (8, tn) partial.  Weights fold the XX+YY-XY-YX block
    means; off-diagonal tiles stand in for their transpose (factor 2)."""
    t = pl.program_id(0)
    i_blk = i_tbl_ref[t]
    j_blk = j_tbl_ref[t]

    xr = xr_ref[...]                                              # (tm, d)
    xc = xc_ref[...]                                              # (tn, d)

    # Pairwise squared distances via the MXU gram (no x.T materialization,
    # contracting dims matched directly on the feature axis).
    sq_r = jnp.sum(xr * xr, axis=1, keepdims=True)                # (tm, 1)
    sq_c = jnp.sum(xc * xc, axis=1, keepdims=True)                # (tn, 1)
    gram = lax.dot_general(xr, xc, (((1,), (1,)), ((), ())),
                           preferred_element_type=jnp.float32)    # (tm, tn)
    # Clamp tiny negatives from the ||a||^2+||b||^2-2<a,b> expansion.
    l2 = jnp.maximum(sq_r + sq_c.T - 2.0 * gram, 0.0)

    # scale_ref holds -1/bandwidth (single scalar in SMEM, hoisted division).
    neg_t = l2 * scale_ref[0, 0]                                  # == -L2 / bw

    if float(kernel_mul) == 2.0 and kernel_num >= 1:
        # exp(-L2/(bw*2^q)), q = kernel_num-1 .. 0, via ONE EUP transcendental
        # plus (kernel_num - 1) VALU squarings.
        e = jnp.exp(neg_t * jnp.float32(1.0 / (2.0 ** (kernel_num - 1))))
        kern = e
        p = e
        for _ in range(kernel_num - 1):
            p = p * p
            kern = kern + p
    else:
        # General path: still only scalar-constant multiplies before each exp.
        kern = jnp.zeros_like(neg_t)
        for q in range(kernel_num):
            kern = kern + jnp.exp(neg_t * jnp.float32(1.0 / (float(kernel_mul) ** q)))

    # Signed block weights factor into an outer product f(row) * g(col):
    #   +1 on source indices (< n_src), -1 on "target" indices (>= n_tgt),
    #   0 on padded rows/cols (mirrors the PyTorch slicing exactly).
    row = i_blk * tm + lax.broadcasted_iota(jnp.int32, (tm, 1), 0)
    col = j_blk * tn + lax.broadcasted_iota(jnp.int32, (1, tn), 1)
    f_r = ((row < n_src).astype(jnp.float32)
           - ((row >= n_tgt) & (row < n_valid)).astype(jnp.float32))   # (tm, 1)
    g_c = ((col < n_src).astype(jnp.float32)
           - ((col >= n_tgt) & (col < n_valid)).astype(jnp.float32))   # (1, tn)
    # Upper-triangular traversal: off-diagonal tiles count for (i,j) and (j,i).
    factor = jnp.where(i_blk == j_blk, jnp.float32(1.0), jnp.float32(2.0))

    # Row weight + VALU-only sublane-group reduce to (8, tn); the cross-lane
    # reduce (and the 1/n_src^2 division) happen once in plain JAX afterwards.
    weighted = kern * f_r                                              # (tm, tn)
    partial = jnp.sum(weighted.reshape(tm // 8, 8, tn), axis=0)        # (8, tn)
    out_ref[0] = partial * (g_c * factor)


def mmd_loss(source, target, kernel_mul=2.0, kernel_num=5, fix_sigma=None):
    """Pallas-TPU equivalent of MMD_Loss.forward(source, target)."""
    source = jnp.asarray(source, jnp.float32)
    target = jnp.asarray(target, jnp.float32)
    n_src = int(source.shape[0])
    n_tgt = int(target.shape[0])
    n_total = n_src + n_tgt
    d = int(source.shape[1])

    # ---- generation-aware tile selection ------------------------------------
    try:
        vmem_cap = int(pltpu.get_tpu_info().vmem_capacity_bytes)
    except Exception:
        vmem_cap = 64 << 20                       # conservative (v7x per-TC VMEM)
    budget = int(vmem_cap * 0.7)

    def footprint(t):
        # 2 input tiles x double buffer (f32) + ~8 (t, t) f32 temporaries.
        return 4 * t * d * 4 + 8 * t * t * 4 + (1 << 20)

    tile = 1024 if vmem_cap >= (100 << 20) else 512
    while tile > 128 and footprint(tile) > budget:
        tile //= 2

    if n_total <= tile:
        tm = tn = _round_up(max(n_total, 8), 8)
    else:
        tm = tn = tile
    n_pad = _round_up(n_total, tm)
    n_blocks = n_pad // tm

    # ---- bandwidth: closed-form O(N*D) reduction (replaces the old pass 1) ----
    total = jnp.concatenate([source, target], axis=0)             # (N, D)
    if fix_sigma:
        bandwidth = jnp.float32(fix_sigma)
    else:
        # sum_{i,j} ||xi - xj||^2 == 2 * N * sum_i ||xi - mean||^2 (exact).
        centered = total - jnp.mean(total, axis=0, keepdims=True)
        l2_sum = 2.0 * jnp.float32(n_total) * jnp.sum(centered * centered)
        bandwidth = l2_sum / jnp.float32(n_total * n_total - n_total)
    bandwidth = bandwidth / jnp.float32(float(kernel_mul) ** (kernel_num // 2))
    # Single scalar reciprocal, hoisted out of the per-element kernel loop.
    neg_inv_bw = jnp.reshape(-1.0 / bandwidth, (1, 1)).astype(jnp.float32)

    # ---- upper-triangular tile schedule (j >= i), scalar-prefetched ----------
    ii, jj = np.triu_indices(n_blocks)
    i_tbl = jnp.asarray(ii, jnp.int32)
    j_tbl = jnp.asarray(jj, jnp.int32)
    n_steps = int(ii.shape[0])

    # Row-pad only; feature axis stays unpadded (block last dim == full dim).
    x_pad = jnp.pad(total, ((0, n_pad - n_total), (0, 0)))

    row_spec = pl.BlockSpec((tm, d), lambda t, it, jt: (it[t], 0))
    col_spec = pl.BlockSpec((tn, d), lambda t, it, jt: (jt[t], 0))
    out_spec = pl.BlockSpec((1, 8, tn), lambda t, it, jt: (t, 0, 0))
    smem_scalar_spec = pl.BlockSpec(memory_space=pltpu.MemorySpace.SMEM)

    vmem_limit = int(min(max(footprint(tm) + (8 << 20), 32 << 20),
                         int(vmem_cap * 0.9)))
    cparams = pltpu.CompilerParams(
        dimension_semantics=("parallel",),        # megacore-shardable on v7x
        vmem_limit_bytes=vmem_limit)

    partials = pl.pallas_call(
        functools.partial(_mmd_tile_kernel, tm=tm, tn=tn, n_src=n_src,
                          n_tgt=n_tgt, n_valid=n_total,
                          kernel_mul=float(kernel_mul),
                          kernel_num=int(kernel_num)),
        out_shape=jax.ShapeDtypeStruct((n_steps, 8, tn), jnp.float32),
        grid_spec=pltpu.PrefetchScalarGridSpec(
            num_scalar_prefetch=2,
            grid=(n_steps,),
            in_specs=[smem_scalar_spec, row_spec, col_spec],
            out_specs=out_spec),
        compiler_params=cparams,
    )(i_tbl, j_tbl, neg_inv_bw, x_pad, x_pad)

    # Final lane/step reduction and the shared 1/n_src^2 divisor in plain JAX.
    return jnp.sum(partials) * jnp.float32(1.0 / float(n_src * n_src))


def _mmd_reference(source, target, kernel_mul=2.0, kernel_num=5, fix_sigma=None):
    """Pure-JAX mirror of the PyTorch module (for validation)."""
    n_samples = source.shape[0] + target.shape[0]
    total = jnp.concatenate([source, target], axis=0)
    diff = total[None, :, :] - total[:, None, :]
    l2 = jnp.sum(diff * diff, axis=2)
    if fix_sigma:
        bandwidth = jnp.float32(fix_sigma)
    else:
        bandwidth = jnp.sum(l2) / (n_samples ** 2 - n_samples)
    bandwidth = bandwidth / (kernel_mul ** (kernel_num // 2))
    kernels = sum(jnp.exp(-l2 / (bandwidth * kernel_mul ** q))
                  for q in range(kernel_num))
    bs, bt = source.shape[0], target.shape[0]
    xx = kernels[:bs, :bs].mean()
    yy = kernels[bt:, bt:].mean()
    xy = kernels[:bs, bt:].mean()
    yx = kernels[bt:, :bs].mean()
    return xx + yy - xy - yx


if __name__ == "__main__":
    key = jax.random.PRNGKey(0)
    k_src, k_tgt = jax.random.split(key)
    # Small shapes consistent with the module: n = m = 8 samples, hidden = 32.
    source = jax.random.normal(k_src, (8, 32), dtype=jnp.float32)
    target = jax.random.normal(k_tgt, (8, 32), dtype=jnp.float32) + 0.5

    loss = jax.jit(mmd_loss)(source, target)
    loss = jax.block_until_ready(loss)

    ref = _mmd_reference(source, target)
    if not bool(jnp.allclose(loss, ref, rtol=1e-3, atol=1e-4)):
        raise AssertionError(f"mismatch: pallas={float(loss)} ref={float(ref)}")
    print("KERNEL_OK")
</pallas_src>

<mosaic_0001>
module attributes {stable_mosaic.version = 11 : i64} {
  func.func @_mmd_tile_kernel(%arg0: i32, %arg1: memref<1xi32, #tpu.memory_space<smem>>, %arg2: memref<1xi32, #tpu.memory_space<smem>>, %arg3: memref<1x1xf32, #tpu.memory_space<smem>>, %arg4: memref<16x32xf32, #tpu.memory_space<vmem>>, %arg5: memref<16x32xf32, #tpu.memory_space<vmem>>, %arg6: memref<1x8x16xf32, #tpu.memory_space<vmem>>) attributes {dimension_semantics = [#tpu.dimension_semantics<parallel>], iteration_bounds = array<i64: 1>, scalar_prefetch = 2 : i64, scratch_operands = 0 : i64, tpu.core_type = #tpu.core_type<tc>, window_params = [{transform_indices = @transform_0, window_bounds = array<i64: 1, 1>}, {transform_indices = @transform_1, window_bounds = array<i64: 16, 32>}, {transform_indices = @transform_2, window_bounds = array<i64: 16, 32>}, {transform_indices = @transform_3, window_bounds = array<i64: 1, 8, 16>}]} {
    %0 = arith.index_cast %arg0 : i32 to index
    %1 = memref.load %arg1[%0] : memref<1xi32, #tpu.memory_space<smem>>
    %2 = arith.index_cast %arg0 : i32 to index
    %3 = memref.load %arg2[%2] : memref<1xi32, #tpu.memory_space<smem>>
    %c0 = arith.constant 0 : index
    %c0_0 = arith.constant 0 : index
    %4 = vector.load %arg4[%c0, %c0_0] : memref<16x32xf32, #tpu.memory_space<vmem>>, vector<16x32xf32>
    %c0_1 = arith.constant 0 : index
    %c0_2 = arith.constant 0 : index
    %5 = vector.load %arg5[%c0_1, %c0_2] : memref<16x32xf32, #tpu.memory_space<vmem>>, vector<16x32xf32>
    %6 = arith.mulf %4, %4 : vector<16x32xf32>
    %cst = arith.constant dense<0.000000e+00> : vector<16xf32>
    %7 = vector.multi_reduction <add>, %6, %cst [1] : vector<16x32xf32> to vector<16xf32>
    %8 = vector.shape_cast %7 : vector<16xf32> to vector<16x1xf32>
    %9 = arith.mulf %5, %5 : vector<16x32xf32>
    %cst_3 = arith.constant dense<0.000000e+00> : vector<16xf32>
    %10 = vector.multi_reduction <add>, %9, %cst_3 [1] : vector<16x32xf32> to vector<16xf32>
    %11 = vector.shape_cast %10 : vector<16xf32> to vector<16x1xf32>
    %cst_4 = arith.constant dense<0.000000e+00> : vector<16x16xf32>
    %12 = tpu.matmul %4, %5, %cst_4 {dimension_numbers = #tpu.dot_dimension_numbers<[1], [1], [0], [0], [0, 0, 1, 0], [], []>} : vector<16x32xf32>, vector<16x32xf32>, vector<16x16xf32> -> vector<16x16xf32>
    %13 = tpu.transpose %11, [1, 0] : vector<16x1xf32> -> vector<1x16xf32>
    %14 = vector.broadcast %8 : vector<16x1xf32> to vector<16x16xf32>
    %15 = vector.broadcast %13 : vector<1x16xf32> to vector<16x16xf32>
    %16 = arith.addf %14, %15 : vector<16x16xf32>
    %cst_5 = arith.constant 2.000000e+00 : f32
    %17 = vector.broadcast %cst_5 : f32 to vector<16x16xf32>
    %18 = arith.mulf %17, %12 : vector<16x16xf32>
    %19 = arith.subf %16, %18 : vector<16x16xf32>
    %cst_6 = arith.constant 0.000000e+00 : f32
    %20 = vector.broadcast %cst_6 : f32 to vector<16x16xf32>
    %21 = arith.maximumf %19, %20 : vector<16x16xf32>
    %c0_7 = arith.constant 0 : index
    %c0_8 = arith.constant 0 : index
    %22 = memref.load %arg3[%c0_7, %c0_8] : memref<1x1xf32, #tpu.memory_space<smem>>
    %23 = vector.broadcast %22 : f32 to vector<16x16xf32>
    %24 = arith.mulf %21, %23 : vector<16x16xf32>
    %cst_9 = arith.constant 6.250000e-02 : f32
    %25 = vector.broadcast %cst_9 : f32 to vector<16x16xf32>
    %26 = arith.mulf %24, %25 : vector<16x16xf32>
    %27 = math.exp %26 : vector<16x16xf32>
    %28 = arith.mulf %27, %27 : vector<16x16xf32>
    %29 = arith.addf %27, %28 : vector<16x16xf32>
    %30 = arith.mulf %28, %28 : vector<16x16xf32>
    %31 = arith.addf %29, %30 : vector<16x16xf32>
    %32 = arith.mulf %30, %30 : vector<16x16xf32>
    %33 = arith.addf %31, %32 : vector<16x16xf32>
    %34 = arith.mulf %32, %32 : vector<16x16xf32>
    %35 = arith.addf %33, %34 : vector<16x16xf32>
    %c16_i32 = arith.constant 16 : i32
    %36 = arith.muli %1, %c16_i32 : i32
    %37 = tpu.iota {dimensions = array<i32: 0>} : vector<16x1xi32>
    %38 = vector.broadcast %36 : i32 to vector<16x1xi32>
    %39 = arith.addi %38, %37 : vector<16x1xi32>
    %c16_i32_10 = arith.constant 16 : i32
    %40 = arith.muli %3, %c16_i32_10 : i32
    %41 = tpu.iota {dimensions = array<i32: 1>} : vector<1x16xi32>
    %42 = vector.broadcast %40 : i32 to vector<1x16xi32>
    %43 = arith.addi %42, %41 : vector<1x16xi32>
    %c8_i32 = arith.constant 8 : i32
    %44 = vector.broadcast %c8_i32 : i32 to vector<16x1xi32>
    %45 = arith.cmpi slt, %39, %44 : vector<16x1xi32>
    %46 = arith.extui %45 : vector<16x1xi1> to vector<16x1xi32>
    %47 = arith.sitofp %46 : vector<16x1xi32> to vector<16x1xf32>
    %c8_i32_11 = arith.constant 8 : i32
    %48 = vector.broadcast %c8_i32_11 : i32 to vector<16x1xi32>
    %49 = arith.cmpi sge, %39, %48 : vector<16x1xi32>
    %c16_i32_12 = arith.constant 16 : i32
    %50 = vector.broadcast %c16_i32_12 : i32 to vector<16x1xi32>
    %51 = arith.cmpi slt, %39, %50 : vector<16x1xi32>
    %52 = arith.andi %49, %51 : vector<16x1xi1>
    %53 = arith.extui %52 : vector<16x1xi1> to vector<16x1xi32>
    %54 = arith.sitofp %53 : vector<16x1xi32> to vector<16x1xf32>
    %55 = arith.subf %47, %54 : vector<16x1xf32>
    %c8_i32_13 = arith.constant 8 : i32
    %56 = vector.broadcast %c8_i32_13 : i32 to vector<1x16xi32>
    %57 = arith.cmpi slt, %43, %56 : vector<1x16xi32>
    %58 = arith.extui %57 : vector<1x16xi1> to vector<1x16xi32>
    %59 = arith.sitofp %58 : vector<1x16xi32> to vector<1x16xf32>
    %c8_i32_14 = arith.constant 8 : i32
    %60 = vector.broadcast %c8_i32_14 : i32 to vector<1x16xi32>
    %61 = arith.cmpi sge, %43, %60 : vector<1x16xi32>
    %c16_i32_15 = arith.constant 16 : i32
    %62 = vector.broadcast %c16_i32_15 : i32 to vector<1x16xi32>
    %63 = arith.cmpi slt, %43, %62 : vector<1x16xi32>
    %64 = arith.andi %61, %63 : vector<1x16xi1>
    %65 = arith.extui %64 : vector<1x16xi1> to vector<1x16xi32>
    %66 = arith.sitofp %65 : vector<1x16xi32> to vector<1x16xf32>
    %67 = arith.subf %59, %66 : vector<1x16xf32>
    %68 = arith.cmpi eq, %1, %3 : i32
    %cst_16 = arith.constant 1.000000e+00 : f32
    %cst_17 = arith.constant 2.000000e+00 : f32
    %69 = arith.select %68, %cst_16, %cst_17 : f32
    %70 = vector.broadcast %55 : vector<16x1xf32> to vector<16x16xf32>
    %71 = arith.mulf %35, %70 : vector<16x16xf32>
    %72 = vector.shape_cast %71 : vector<16x16xf32> to vector<2x8x16xf32>
    %cst_18 = arith.constant dense<0.000000e+00> : vector<8x16xf32>
    %73 = vector.multi_reduction <add>, %72, %cst_18 [0] : vector<2x8x16xf32> to vector<8x16xf32>
    %74 = vector.broadcast %69 : f32 to vector<1x16xf32>
    %75 = arith.mulf %67, %74 : vector<1x16xf32>
    %76 = vector.broadcast %75 : vector<1x16xf32> to vector<8x16xf32>
    %77 = arith.mulf %73, %76 : vector<8x16xf32>
    %c0_19 = arith.constant 0 : index
    %c0_20 = arith.constant 0 : index
    %c0_21 = arith.constant 0 : index
    %78 = vector.load %arg6[%c0_19, %c0_20, %c0_21] : memref<1x8x16xf32, #tpu.memory_space<vmem>>, vector<1x8x16xf32>
    %79 = vector.shape_cast %78 : vector<1x8x16xf32> to vector<8x16xf32>
    %80 = vector.shape_cast %77 : vector<8x16xf32> to vector<1x8x16xf32>
    tpu.vector_store %arg6[%c0_19, %c0_20, %c0_21], %80 {strides = array<i32>} : memref<1x8x16xf32, #tpu.memory_space<vmem>>, vector<1x8x16xf32>,
    return
  }
  func.func @transform_0(%arg0: i32, %arg1: memref<1xi32, #tpu.memory_space<smem>>, %arg2: memref<1xi32, #tpu.memory_space<smem>>) -> (i32, i32) {
    %c0_i32 = arith.constant 0 : i32
    %c0_i32_0 = arith.constant 0 : i32
    %c0_i32_1 = arith.constant 0 : i32
    return %c0_i32, %c0_i32_0 : i32, i32
  }
  func.func @transform_1(%arg0: i32, %arg1: memref<1xi32, #tpu.memory_space<smem>>, %arg2: memref<1xi32, #tpu.memory_space<smem>>) -> (i32, i32) {
    %0 = arith.index_cast %arg0 : i32 to index
    %1 = memref.load %arg1[%0] : memref<1xi32, #tpu.memory_space<smem>>
    %c0_i32 = arith.constant 0 : i32
    %c0_i32_0 = arith.constant 0 : i32
    return %1, %c0_i32 : i32, i32
  }
  func.func @transform_2(%arg0: i32, %arg1: memref<1xi32, #tpu.memory_space<smem>>, %arg2: memref<1xi32, #tpu.memory_space<smem>>) -> (i32, i32) {
    %0 = arith.index_cast %arg0 : i32 to index
    %1 = memref.load %arg2[%0] : memref<1xi32, #tpu.memory_space<smem>>
    %c0_i32 = arith.constant 0 : i32
    %c0_i32_0 = arith.constant 0 : i32
    return %1, %c0_i32 : i32, i32
  }
  func.func @transform_3(%arg0: i32, %arg1: memref<1xi32, #tpu.memory_space<smem>>, %arg2: memref<1xi32, #tpu.memory_space<smem>>) -> (i32, i32, i32) {
    %c0_i32 = arith.constant 0 : i32
    %c0_i32_0 = arith.constant 0 : i32
    %c0_i32_1 = arith.constant 0 : i32
    return %arg0, %c0_i32, %c0_i32_0 : i32, i32, i32
  }
}

</mosaic_0001>

<llo_original>
// kernel: mmd_loss.1
$region0: #{mmd_loss.1}
  #allocation0 [shape = 'u32[]', space=smem, size = 0x4, offset = 0x4, fixed_abs, tag = 'smem constant byte address 0x4 - core index']
  #allocation1 [shape = 'u32[144,128]{1,0:T(1,128)}', space=vmem, size = 0x12000, scoped, tag = 'internal scratch']
  #allocation2 [shape = 's32[1]{0}', space=sflag, size = 0x4, scoped, tag = 'scoped memory for mmd_loss.1']
  #allocation3 [shape = 's32[1]{0:T(128)S(6)}', space=smem, size = 0x200, scoped, tag = 'prefetched SMEM operand 0']
  #allocation4 [shape = 's32[1]{0:T(128)S(6)}', space=smem, size = 0x200, scoped, tag = 'prefetched SMEM operand 1']
  #allocation5 [shape = 'f32[1,1]{1,0:T(1,128)S(6)}', space=smem, size = 0x200, scoped, tag = 'scoped memory for mmd_loss.1']
  %s0 = inlined_call_operand.<no memory space> [shape: s32[1], index: 0, kind: input, shape index: {}, may-alias: {0,1}]
  %s1 = inlined_call_operand.<no memory space> [shape: s32[1], index: 1, kind: input, shape index: {}, may-alias: {0,1}]
  %s2 = inlined_call_operand.<no memory space> [shape: f32[1,1], index: 2, kind: input, shape index: {}]
  %s3 = inlined_call_operand.vmem [shape: f32[16,32], index: 3, kind: input, shape index: {}, may-alias: {3,4}]
  %s4 = inlined_call_operand.vmem [shape: f32[16,32], index: 4, kind: input, shape index: {}, may-alias: {3,4}]
  %s5 = inlined_call_operand.vmem [shape: f32[1,8,16], index: 5, kind: output, shape index: {}]
  %s6 = sld [smem:[#allocation0]]
  $region22: #{mmd_loss.1} parent=0
    _
  %s8 = ssub.s32 1, %s6
  %s9 = scalar_select 0, %s8, %s6
  %10 = sst [smem:[#allocation3]] %s0
  %11 = sst [smem:[#allocation4]] %s1
  %12 = sst [smem:[#allocation5]] %s2
  // Predicated region
  $region2: #{mmd_loss.1} parent=0 // pred_check
    _
  $region3: #{mmd_loss.1} parent=0 // pred_check_branch
    %14 = sbr.rel (0) target = $region5
  $region4: #{mmd_loss.1} parent=0 // pred_region
    _
  $region5: #{mmd_loss.1} parent=0 // pred_fallthru
    _
  // Predicated region
  $region6: #{mmd_loss.1} parent=0 // pred_check
    _
  $region7: #{mmd_loss.1} parent=0 // pred_check_branch
    %16 = sbr.rel (0) target = $region9
  $region8: #{mmd_loss.1} parent=0 // pred_region
    %s17 = sld [smem:[#allocation3]]
    %s18 = smul.u32 2, %s17
    %p19 = scmp.lt.s32.totalorder %s18, 1
    %s20 = scalar_select %p19, %s18, 1
    %s21 = smul.addr %s20, 8
    %s22 = scalar_lea.vmem %s3, %s21
    %s23 = sld [smem:[#allocation3]]
    %s24 = smul.u32 2, %s23
  $region9: #{mmd_loss.1} parent=0 // pred_fallthru
    _
  // Predicated region
  $region10: #{mmd_loss.1} parent=0 // pred_check
    _
  $region11: #{mmd_loss.1} parent=0 // pred_check_branch
    %26 = sbr.rel (0) target = $region13
  $region12: #{mmd_loss.1} parent=0 // pred_region
    %s27 = sld [smem:[#allocation4]]
    %s28 = smul.u32 2, %s27
    %p29 = scmp.lt.s32.totalorder %s28, 1
    %s30 = scalar_select %p29, %s28, 1
    %s31 = smul.addr %s30, 8
    %s32 = scalar_lea.vmem %s4, %s31
    %s33 = sld [smem:[#allocation4]]
    %s34 = smul.u32 2, %s33
  $region13: #{mmd_loss.1} parent=0 // pred_fallthru
    _
  %s35 = sld [smem:[#allocation3]]
  %s36 = smul.u32 2, %s35
  %p37 = scmp.lt.s32.totalorder %s36, 1
  %s38 = scalar_select %p37, %s36, 1
  %s39 = smul.addr %s38, 8
  %s40 = scalar_lea.vmem %s3, %s39
  %s41 = sld [smem:[#allocation4]]
  %s42 = smul.u32 2, %s41
  %p43 = scmp.lt.s32.totalorder %s42, 1
  %s44 = scalar_select %p43, %s42, 1
  %s45 = smul.addr %s44, 8
  %s46 = scalar_lea.vmem %s4, %s45
  %s47 = sld [smem:[#allocation3]]
  %s48 = smul.u32 2, %s47
  %p49 = scmp.lt.s32.totalorder %s48, 1
  %s50 = scalar_select %p49, %s48, 1
  %s51 = smul.addr %s50, 8
  %s52 = scalar_lea.vmem %s3, %s51
  %s53 = sld [smem:[#allocation3]]
  %s54 = smul.u32 2, %s53
  %s55 = sld [smem:[#allocation4]]
  %s56 = smul.u32 2, %s55
  %p57 = scmp.lt.s32.totalorder %s56, 1
  %s58 = scalar_select %p57, %s56, 1
  %s59 = smul.addr %s58, 8
  %s60 = scalar_lea.vmem %s4, %s59
  %s61 = sld [smem:[#allocation4]]
  %s62 = smul.u32 2, %s61
  %s63 = sld [smem:[#allocation3]]
  %s64 = sld [smem:[#allocation4]]
  %v65 = vld [vmem:[%s52] sm:$0xff]
  %v66 = vld [vmem:[%s52 + $0x8] sm:$0xff]
  %v67 = vld [vmem:[%s60] sm:$0xff]
  %v68 = vld [vmem:[%s60 + $0x8] sm:$0xff]
  %v69 = vmul.f32 %v65, %v65
  %v70 = vmul.f32 %v66, %v66
  %vm71 = vcmask 261120
  %v72 = vsel %vm71, %v69, 0.0
  %73 = vadd.xlane.f32.xlu0 %v72
  %v74 = vpop.xlane.xlu0 %73
  %v75 = vsel %vm71, %v70, 0.0
  %76 = vadd.xlane.f32.xlu0 %v75
  %v77 = vpop.xlane.xlu0 %76
  %v78 = vmul.f32 %v67, %v67
  %v79 = vmul.f32 %v68, %v68
  %v80 = vsel %vm71, %v78, 0.0
  %81 = vadd.xlane.f32.xlu0 %v80
  %v82 = vpop.xlane.xlu0 %81
  %v83 = vsel %vm71, %v79, 0.0
  %84 = vadd.xlane.f32.xlu0 %v83
  %v85 = vpop.xlane.xlu0 %84
  %v87 = vsel %vm71, %v65, 0
  %v90 = vsel %vm71, %v66, 0
  %v93 = vsel %vm71, %v67, 0
  %v96 = vsel %vm71, %v68, 0
  %98 = vmatprep.subr.mxu0 0.0
  %99 = vmatpush1.xpose.msra.mxu0 %v93
  %100 = vmatprep.subr.mxu0 0.0
  %101 = vmatpush1.xpose.msra.mxu0 %v96
  %102 = vmatprep.subr.mxu0 0.0
  %103 = vmatpush1.xpose.msra.mxu0 0.0
  %104 = vmatprep.subr.mxu0 0.0
  %105 = vmatpush1.xpose.msra.mxu0 0.0
  %106 = vmatprep.subr.mxu0 0.0
  %107 = vmatpush1.xpose.msra.mxu0 0.0
  %108 = vmatprep.subr.mxu0 0.0
  %109 = vmatpush1.xpose.msra.mxu0 0.0
  %110 = vmatprep.subr.mxu0 0.0
  %111 = vmatpush1.xpose.msra.mxu0 0.0
  %112 = vmatprep.subr.mxu0 0.0
  %113 = vmatpush1.xpose.msra.mxu0 0.0
  %114 = vmatprep.subr.mxu0 0.0
  %115 = vmatpush1.xpose.msra.mxu0 0.0
  %116 = vmatprep.subr.mxu0 0.0
  %117 = vmatpush1.xpose.msra.mxu0 0.0
  %118 = vmatprep.subr.mxu0 0.0
  %119 = vmatpush1.xpose.msra.mxu0 0.0
  %120 = vmatprep.subr.mxu0 0.0
  %121 = vmatpush1.xpose.msra.mxu0 0.0
  %122 = vmatprep.subr.mxu0 0.0
  %123 = vmatpush1.xpose.msra.mxu0 0.0
  %124 = vmatprep.subr.mxu0 0.0
  %125 = vmatpush1.xpose.msra.mxu0 0.0
  %126 = vmatprep.subr.mxu0 0.0
  %127 = vmatpush1.xpose.msra.mxu0 0.0
  %128 = vmatprep.subr.mxu0 0.0
  %129 = vmatpush1.xpose.msra.mxu0 0.0
  %130 = vmatprep.subr.mxu0 0.0
  %131 = vmatpush1.xpose.msra.mxu0 0.0
  %132 = vmatprep.subr.mxu0 0.0
  %133 = vmatpush1.xpose.msra.mxu0 0.0
  %134 = vmatprep.subr.mxu0 0.0
  %135 = vmatpush1.xpose.msra.mxu0 0.0
  %136 = vmatprep.subr.mxu0 0.0
  %137 = vmatpush1.xpose.msra.mxu0 0.0
  %138 = vmatprep.subr.mxu0 0.0
  %139 = vmatpush1.xpose.msra.mxu0 0.0
  %140 = vmatprep.subr.mxu0 0.0
  %141 = vmatpush1.xpose.msra.mxu0 0.0
  %142 = vmatprep.subr.mxu0 0.0
  %143 = vmatpush1.xpose.msra.mxu0 0.0
  %144 = vmatprep.subr.mxu0 0.0
  %145 = vmatpush1.xpose.msra.mxu0 0.0
  %146 = vmatprep.subr.mxu0 0.0
  %147 = vmatpush1.xpose.msra.mxu0 0.0
  %148 = vmatprep.subr.mxu0 0.0
  %149 = vmatpush1.xpose.msra.mxu0 0.0
  %150 = vmatprep.subr.mxu0 0.0
  %151 = vmatpush1.xpose.msra.mxu0 0.0
  %152 = vmatprep.subr.mxu0 0.0
  %153 = vmatpush1.xpose.msra.mxu0 0.0
  %154 = vmatprep.subr.mxu0 0.0
  %155 = vmatpush1.xpose.msra.mxu0 0.0
  %156 = vmatprep.subr.mxu0 0.0
  %157 = vmatpush1.xpose.msra.mxu0 0.0
  %158 = vmatprep.subr.mxu0 0.0
  %159 = vmatpush1.xpose.msra.mxu0 0.0
  %160 = vmatprep.subr.mxu0 0.0
  %161 = vmatpush1.xpose.msra.mxu0 0.0
  %162 = vmatprep.mubr.f32.mxu0 0.0
  %163 = vmatmul.mubr.f32.gmra.mrb[0].mxu0 %v87
  %v164 = vpop.f32.mrb[0].mxu0
  %v165 = vadd.f32 0.0, %v164
  %v166 = vpop.f32.mrb[0].mxu0
  %167 = vmatprep.mubr.f32.mxu0 0.0
  %168 = vmatmul.mubr.f32.gmra.mrb[0].mxu0 %v90
  %v169 = vpop.f32.mrb[0].mxu0
  %v170 = vadd.f32 0.0, %v169
  %v171 = vpop.f32.mrb[0].mxu0
  %172 = vdwg.mxu0
  %173 = vxpose.xlu0.b32.start [1/16] %v82, 128
  %174 = vxpose.xlu0.b32.cont [2/16] %v85, 128
  %175 = vxpose.xlu0.b32.cont [3/16] 0.0, 128
  %176 = vxpose.xlu0.b32.cont [4/16] 0.0, 128
  %177 = vxpose.xlu0.b32.cont [5/16] 0.0, 128
  %178 = vxpose.xlu0.b32.cont [6/16] 0.0, 128
  %179 = vxpose.xlu0.b32.cont [7/16] 0.0, 128
  %180 = vxpose.xlu0.b32.cont [8/16] 0.0, 128
  %181 = vxpose.xlu0.b32.cont [9/16] 0.0, 128
  %182 = vxpose.xlu0.b32.cont [10/16] 0.0, 128
  %183 = vxpose.xlu0.b32.cont [11/16] 0.0, 128
  %184 = vxpose.xlu0.b32.cont [12/16] 0.0, 128
  %185 = vxpose.xlu0.b32.cont [13/16] 0.0, 128
  %186 = vxpose.xlu0.b32.cont [14/16] 0.0, 128
  %187 = vxpose.xlu0.b32.cont [15/16] 0.0, 128
  %188 = vxpose.xlu0.b32.end [16/16] 0.0, 128
  %v189 = vpop.trf.xlu0
  %v190 = vpop.trf.xlu0
  %v191 = vpop.trf.xlu0
  %v192 = vpop.trf.xlu0
  %v193 = vpop.trf.xlu0
  %v194 = vpop.trf.xlu0
  %v195 = vpop.trf.xlu0
  %v196 = vpop.trf.xlu0
  %v197 = vpop.trf.xlu0
  %v198 = vpop.trf.xlu0
  %v199 = vpop.trf.xlu0
  %v200 = vpop.trf.xlu0
  %v201 = vpop.trf.xlu0
  %v202 = vpop.trf.xlu0
  %v203 = vpop.trf.xlu0
  %v204 = vpop.trf.xlu0
  %v205 = vlaneseq
  %v206 = vshrl.u32 %v205, 7
  %v207 = vsub.s32 0, %v206
  %v208 = vrot.slane %v189, %v207
  %v209 = vadd.f32 %v74, %v208
  %v210 = vadd.f32 %v77, %v208
  %v211 = vmul.f32 %v165, 2.0
  %v212 = vmul.f32 %v170, 2.0
  %v213 = vsub.f32 %v209, %v211
  %v214 = vsub.f32 %v210, %v212
  %v215 = vmax.f32 %v213, 0.0
  %v216 = vmax.f32 %v214, 0.0
  %s217 = sld [smem:[#allocation5]]
  %v218 = vstv %s217
  %v219 = vmul.f32 %v215, %v218
  %v220 = vmul.f32 %v216, %v218
  %v221 = vmul.f32 %v219, 0.0625
  %v222 = vmul.f32 %v220, 0.0625
  %v223 = vmul.f32 %v221, 1.442695
  %v224 = vpow.pop %v223
  %v225 = vmul.f32 %v222, 1.442695
  %v226 = vpow.pop %v225
  %v227 = vmul.f32 %v224, %v224
  %v228 = vmul.f32 %v226, %v226
  %v229 = vadd.f32 %v224, %v227
  %v230 = vadd.f32 %v226, %v228
  %v231 = vmul.f32 %v227, %v227
  %v232 = vmul.f32 %v228, %v228
  %v233 = vadd.f32 %v229, %v231
  %v234 = vadd.f32 %v230, %v232
  %v235 = vmul.f32 %v231, %v231
  %v236 = vmul.f32 %v232, %v232
  %v237 = vadd.f32 %v233, %v235
  %v238 = vadd.f32 %v234, %v236
  %v239 = vmul.f32 %v235, %v235
  %v240 = vmul.f32 %v236, %v236
  %v241 = vadd.f32 %v237, %v239
  %v242 = vadd.f32 %v238, %v240
  %s243 = smul.u32 %s63, 16
  %v244 = vlaneseq
  %v245 = vshrl.u32 %v244, 7
  %v246 = vadd.s32 %v245, 8
  %v247 = vstv %s243
  %v248 = vadd.s32 %v247, %v245
  %v249 = vadd.s32 %v247, %v246
  %s250 = smul.u32 %s64, 16
  %v251 = vlaneseq
  %v252 = vand.u32 %v251, 127
  %v253 = vstv %s250
  %v254 = vadd.s32 %v253, %v252
  %vm255 = vcmp.lt.s32.totalorder %v248, 8
  %vm256 = vcmp.lt.s32.totalorder %v249, 8
  %v257 = vsel %vm255, 1, 0
  %v258 = vsel %vm256, 1, 0
  %v259 = vcvt.s32.f32 %v257
  %v260 = vcvt.s32.f32 %v258
  %vm261 = vcmp.ge.s32.totalorder %v248, 8
  %vm262 = vcmp.ge.s32.totalorder %v249, 8
  %vm263 = vcmp.lt.s32.totalorder %v248, 16
  %vm264 = vcmp.lt.s32.totalorder %v249, 16
  %vm265 = vmand %vm261, %vm263
  %vm266 = vmand %vm262, %vm264
  %v267 = vsel %vm265, 1, 0
  %v268 = vsel %vm266, 1, 0
  %v269 = vcvt.s32.f32 %v267
  %v270 = vcvt.s32.f32 %v268
  %v271 = vsub.f32 %v259, %v269
  %v272 = vsub.f32 %v260, %v270
  %vm273 = vcmp.lt.s32.totalorder %v254, 8
  %v274 = vsel %vm273, 1, 0
  %v275 = vcvt.s32.f32 %v274
  %vm276 = vcmp.ge.s32.totalorder %v254, 8
  %vm277 = vcmp.lt.s32.totalorder %v254, 16
  %vm278 = vmand %vm276, %vm277
  %v279 = vsel %vm278, 1, 0
  %v280 = vcvt.s32.f32 %v279
  %v281 = vsub.f32 %v275, %v280
  %p282 = scmp.eq.s32.totalorder %s63, %s64
  %s283 = scalar_select %p282, 1.0, 2.0
  %v284 = vmul.f32 %v241, %v271
  %v285 = vmul.f32 %v242, %v272
  %vm286 = vcmask 130048
  %v287 = vsel %vm286, %v284, 0.0
  %v288 = vsel %vm286, %v285, 0.0
  %v289 = vadd.f32 %v287, %v288
  %v290 = vstv %s283
  %v291 = vmul.f32 %v281, %v290
  %v292 = vmul.f32 %v289, %v291
  %293 = vst.msk [vmem:[%s5] sm:$0xff] %vm286, %v292
  // Predicated region
  $region14: #{mmd_loss.1} parent=0 // pred_check
    _
  $region15: #{mmd_loss.1} parent=0 // pred_check_branch
    %295 = sbr.rel (0) target = $region17
  $region16: #{mmd_loss.1} parent=0 // pred_region
    _
  $region17: #{mmd_loss.1} parent=0 // pred_fallthru
    _
  // Predicated region
  $region18: #{mmd_loss.1} parent=0 // pred_check
    _
  $region19: #{mmd_loss.1} parent=0 // pred_check_branch
    %297 = sbr.rel (0) target = $region21
  $region20: #{mmd_loss.1} parent=0 // pred_region
    _
  $region21: #{mmd_loss.1} parent=0 // pred_fallthru
    _

</llo_original>
